<compile_context>
chip_gen: v6e
topology: v6e:2x2x1
jax: 0.10.0
libtpu: 0.0.40
codegen_flags: <defaults>
</compile_context>

<pallas_src>
import jax
import jax.numpy as jnp
import numpy as np
from jax.experimental import pallas as pl
from jax.experimental.pallas import tpu as pltpu


# ---------------------------------------------------------------------------
# Kernel 1 (runs once at prep time): build the per-class output table.
#   table = relu(emb @ W1 + b1) @ W2 + b2                        (C, O)
# ---------------------------------------------------------------------------
def _build_table_kernel(emb_ref, w1_ref, b1_ref, w2_ref, b2_ref, table_ref):
    # emb_ref: (C, E), w1_ref: (E, H), b1_ref: (1, H),
    # w2_ref: (H, O), b2_ref: (1, O), table_ref: (C, O)
    h = jnp.dot(emb_ref[...], w1_ref[...], preferred_element_type=jnp.float32)
    h = jnp.maximum(h + b1_ref[...], 0.0)                         # (C, H)
    t = jnp.dot(h, w2_ref[...], preferred_element_type=jnp.float32)
    table_ref[...] = t + b2_ref[...]                              # (C, O)


def prepare_params(embedding, w1, b1, w2, b2):
    """One-time parameter prep: collapse the whole MLP into a (C, O) table."""
    emb = embedding.astype(jnp.float32)                # (C, E)
    w1t = w1.T.astype(jnp.float32)                     # (E, H)  pre-transposed
    b1r = b1.reshape(1, -1).astype(jnp.float32)        # (1, H)
    w2t = w2.T.astype(jnp.float32)                     # (H, O)  pre-transposed
    b2r = b2.reshape(1, -1).astype(jnp.float32)        # (1, O)

    C, E = emb.shape
    H = w1t.shape[1]
    O = w2t.shape[1]

    vmem = pl.BlockSpec(memory_space=pltpu.MemorySpace.VMEM)
    table = pl.pallas_call(
        _build_table_kernel,
        out_shape=jax.ShapeDtypeStruct((C, O), jnp.float32),
        in_specs=[vmem, vmem, vmem, vmem, vmem],
        out_specs=vmem,
        cost_estimate=pl.CostEstimate(
            flops=2 * (C * E * H + C * H * O),
            transcendentals=0,
            bytes_accessed=4 * (C * E + E * H + H + H * O + O + C * O)),
    )(emb, w1t, b1r, w2t, b2r)
    return table


# ---------------------------------------------------------------------------
# Kernel 2 (per call): forward pass = vectorized gather of table rows.
# ---------------------------------------------------------------------------
def _gather_kernel(cond_ref, table_ref, out_ref):
    # cond_ref:  (B, 1) int32   in VMEM
    # table_ref: (C, O) float32 in VMEM
    # out_ref:   (B, O) float32 in VMEM
    B = out_ref.shape[0]
    C = table_ref.shape[0]
    cls = jax.lax.broadcasted_iota(jnp.int32, (B, C), 1)          # (B, C)
    onehot = (cls == cond_ref[...]).astype(jnp.float32)           # (B, C)
    # Tiny MXU push assembles all B rows; one (B, O) vector store.
    out_ref[...] = jnp.dot(onehot, table_ref[...],
                           preferred_element_type=jnp.float32)


def condition_encoder(condition, table):
    """condition: (B,) int class ids; table: (C, O) from prepare_params()."""
    B = condition.shape[0]
    C, O = table.shape
    cond2d = condition.reshape(B, 1).astype(jnp.int32)

    vmem = pl.BlockSpec(memory_space=pltpu.MemorySpace.VMEM)
    return pl.pallas_call(
        _gather_kernel,
        out_shape=jax.ShapeDtypeStruct((B, O), jnp.float32),
        in_specs=[vmem, vmem],
        out_specs=vmem,
        cost_estimate=pl.CostEstimate(
            flops=2 * B * C * O,
            transcendentals=0,
            bytes_accessed=4 * (B + C * O + B * O)),
    )(cond2d, table)


def reference(condition, embedding, w1, b1, w2, b2):
    x = embedding[condition]                       # (B, E)
    h = jnp.maximum(x @ w1.T + b1, 0.0)            # (B, H)
    return h @ w2.T + b2                           # (B, O)


if __name__ == "__main__":
    # Module hyperparameters (small, consistent with ConditionEncoder.__init__)
    num_classes, embedding_dim, hidden_dim, output_dim = 10, 16, 32, 64
    batch = 8

    key = jax.random.PRNGKey(0)
    k_emb, k_w1, k_b1, k_w2, k_b2, k_cond = jax.random.split(key, 6)

    # Deterministic "parameters" (PyTorch (out_features, in_features) layout)
    embedding = jax.random.normal(k_emb, (num_classes, embedding_dim),
                                  dtype=jnp.float32)
    w1 = jax.random.normal(k_w1, (hidden_dim, embedding_dim),
                           dtype=jnp.float32) * 0.1
    b1 = jax.random.normal(k_b1, (hidden_dim,), dtype=jnp.float32) * 0.1
    w2 = jax.random.normal(k_w2, (output_dim, hidden_dim),
                           dtype=jnp.float32) * 0.1
    b2 = jax.random.normal(k_b2, (output_dim,), dtype=jnp.float32) * 0.1

    # Example condition (class labels)
    condition = jax.random.randint(k_cond, (batch,), 0, num_classes,
                                   dtype=jnp.int32)

    # One-time prep (table build), then the cheap per-call gather kernel.
    table = prepare_params(embedding, w1, b1, w2, b2)
    table = jax.block_until_ready(table)

    out = condition_encoder(condition, table)
    out = jax.block_until_ready(out)

    ref = reference(condition, embedding, w1, b1, w2, b2)
    np.testing.assert_allclose(np.asarray(out), np.asarray(ref),
                               rtol=1e-5, atol=1e-5)
    print("KERNEL_OK")
</pallas_src>

<mosaic_0001>
module attributes {stable_mosaic.version = 11 : i64} {
  func.func @_build_table_kernel(%arg0: memref<10x16xf32, #tpu.memory_space<vmem>>, %arg1: memref<16x32xf32, #tpu.memory_space<vmem>>, %arg2: memref<1x32xf32, #tpu.memory_space<vmem>>, %arg3: memref<32x64xf32, #tpu.memory_space<vmem>>, %arg4: memref<1x64xf32, #tpu.memory_space<vmem>>, %arg5: memref<10x64xf32, #tpu.memory_space<vmem>>) attributes {dimension_semantics = [], scalar_prefetch = 0 : i64, scratch_operands = 0 : i64, tpu.core_type = #tpu.core_type<tc>} {
    %c0 = arith.constant 0 : index
    %c0_0 = arith.constant 0 : index
    %0 = vector.load %arg0[%c0, %c0_0] : memref<10x16xf32, #tpu.memory_space<vmem>>, vector<10x16xf32>
    %c0_1 = arith.constant 0 : index
    %c0_2 = arith.constant 0 : index
    %1 = vector.load %arg1[%c0_1, %c0_2] : memref<16x32xf32, #tpu.memory_space<vmem>>, vector<16x32xf32>
    %cst = arith.constant dense<0.000000e+00> : vector<10x32xf32>
    %2 = tpu.matmul %0, %1, %cst {dimension_numbers = #tpu.dot_dimension_numbers<[1], [0], [0], [1], [0, 0, 1, 1], [], []>} : vector<10x16xf32>, vector<16x32xf32>, vector<10x32xf32> -> vector<10x32xf32>
    %c0_3 = arith.constant 0 : index
    %c0_4 = arith.constant 0 : index
    %3 = vector.load %arg2[%c0_3, %c0_4] : memref<1x32xf32, #tpu.memory_space<vmem>>, vector<1x32xf32>
    %4 = vector.broadcast %3 : vector<1x32xf32> to vector<10x32xf32>
    %5 = arith.addf %2, %4 : vector<10x32xf32>
    %cst_5 = arith.constant 0.000000e+00 : f32
    %6 = vector.broadcast %cst_5 : f32 to vector<10x32xf32>
    %7 = arith.maximumf %5, %6 : vector<10x32xf32>
    %c0_6 = arith.constant 0 : index
    %c0_7 = arith.constant 0 : index
    %8 = vector.load %arg3[%c0_6, %c0_7] : memref<32x64xf32, #tpu.memory_space<vmem>>, vector<32x64xf32>
    %cst_8 = arith.constant dense<0.000000e+00> : vector<10x64xf32>
    %9 = tpu.matmul %7, %8, %cst_8 {dimension_numbers = #tpu.dot_dimension_numbers<[1], [0], [0], [1], [0, 0, 1, 1], [], []>} : vector<10x32xf32>, vector<32x64xf32>, vector<10x64xf32> -> vector<10x64xf32>
    %c0_9 = arith.constant 0 : index
    %c0_10 = arith.constant 0 : index
    %10 = vector.load %arg4[%c0_9, %c0_10] : memref<1x64xf32, #tpu.memory_space<vmem>>, vector<1x64xf32>
    %11 = vector.broadcast %10 : vector<1x64xf32> to vector<10x64xf32>
    %12 = arith.addf %9, %11 : vector<10x64xf32>
    %c0_11 = arith.constant 0 : index
    %c0_12 = arith.constant 0 : index
    %13 = vector.load %arg5[%c0_11, %c0_12] : memref<10x64xf32, #tpu.memory_space<vmem>>, vector<10x64xf32>
    tpu.vector_store %arg5[%c0_11, %c0_12], %12 {strides = array<i32>} : memref<10x64xf32, #tpu.memory_space<vmem>>, vector<10x64xf32>,
    return
  }
}

</mosaic_0001>

<llo_original>
// kernel: tpu_custom_call.1
$region0: #{tpu_custom_call.1}
  #allocation0 [shape = 'u32[]', space=smem, size = 0x4, offset = 0x4, fixed_abs, tag = 'smem constant byte address 0x4 - core index']
  #allocation1 [shape = 'u32[144,128]{1,0:T(1,128)}', space=vmem, size = 0x12000, scoped, tag = 'internal scratch']
  %s0 = inlined_call_operand.hbm [shape: f32[10,16], index: 0, kind: input, shape index: {}]
  %s1 = inlined_call_operand.hbm [shape: f32[16,32], index: 1, kind: input, shape index: {}]
  %s2 = inlined_call_operand.vmem [shape: f32[1,32], index: 2, kind: input, shape index: {}]
  %s3 = inlined_call_operand.hbm [shape: f32[32,64], index: 3, kind: input, shape index: {}]
  %s4 = inlined_call_operand.vmem [shape: f32[1,64], index: 4, kind: input, shape index: {}]
  %s5 = inlined_call_operand.hbm [shape: f32[10,64], index: 5, kind: output, shape index: {}]
  %s6 = sld [smem:[#allocation0]]
  $region42: #{tpu_custom_call.1} parent=0
    _
  %s8 = ssub.s32 1, %s6
  %s9 = scalar_select 0, %s8, %s6
  $region1: #{tpu_custom_call.1} parent=0
    #allocation2 [shape = 'u8[8192]{0}', space=vmem, size = 0x2000, scoped, tag = 'input window, operand 0, single buffered']
    #allocation3 [shape = 's32[1]{0}', space=sflag, size = 0x4, scoped, tag = 'scoped memory for tpu_custom_call.1']
    #allocation4 [shape = 's32[1]{0}', space=sflag, size = 0x4, scoped, tag = 'scoped memory for tpu_custom_call.1']
    #allocation5 [shape = 'u8[8192]{0}', space=vmem, size = 0x2000, scoped, tag = 'input window, operand 1, single buffered']
    #allocation6 [shape = 's32[1]{0}', space=sflag, size = 0x4, scoped, tag = 'scoped memory for tpu_custom_call.1']
    #allocation7 [shape = 'u8[16384]{0}', space=vmem, size = 0x4000, scoped, tag = 'input window, operand 3, single buffered']
    #allocation8 [shape = 'u8[8192]{0}', space=vmem, size = 0x2000, scoped, tag = 'output window, operand 0, single buffered']
    %10 = vsyncpa [#allocation3], 0
    %11 = vsyncpa [#allocation6], 0
    %12 = vsyncpa [#allocation4], 0
    // Predicated region
    $region2: #{tpu_custom_call.1} parent=1 // pred_check
      _
    $region3: #{tpu_custom_call.1} parent=1 // pred_check_branch
      %14 = sbr.rel (0) target = $region5
    $region4: #{tpu_custom_call.1} parent=1 // pred_region
      %s16 = ssub.s32 256, 256
      %17 = vsyncadd [#allocation3], %s16
      %s18 = sshll.u32 [#allocation2], 4
      %s19 = int_to_ptr.vmem [resolvable:$true] %s18
      %24 = dma.hbm_to_vmem [thread:$0]  %s0, 256, %s19, [#allocation3], 128, 128, 8
    $region5: #{tpu_custom_call.1} parent=1 // pred_fallthru
      _
    // Predicated region
    $region6: #{tpu_custom_call.1} parent=1 // pred_check
      _
    $region7: #{tpu_custom_call.1} parent=1 // pred_check_branch
      %26 = sbr.rel (0) target = $region9
    $region8: #{tpu_custom_call.1} parent=1 // pred_region
      %s28 = ssub.s32 256, 256
      %29 = vsyncadd [#allocation6], %s28
      %s30 = sshll.u32 [#allocation5], 4
      %s31 = int_to_ptr.vmem [resolvable:$true] %s30
      %36 = dma.hbm_to_vmem [thread:$0]  %s1, 256, %s31, [#allocation6], 128, 128, 8
    $region9: #{tpu_custom_call.1} parent=1 // pred_fallthru
      _
    // Predicated region
    $region10: #{tpu_custom_call.1} parent=1 // pred_check
      _
    $region11: #{tpu_custom_call.1} parent=1 // pred_check_branch
      %38 = sbr.rel (0) target = $region13
    $region12: #{tpu_custom_call.1} parent=1 // pred_region
      _
    $region13: #{tpu_custom_call.1} parent=1 // pred_fallthru
      _
    // Predicated region
    $region14: #{tpu_custom_call.1} parent=1 // pred_check
      _
    $region15: #{tpu_custom_call.1} parent=1 // pred_check_branch
      %40 = sbr.rel (0) target = $region17
    $region16: #{tpu_custom_call.1} parent=1 // pred_region
      %s42 = ssub.s32 512, 512
      %43 = vsyncadd [#allocation6], %s42
      %s44 = sshll.u32 [#allocation7], 4
      %s45 = int_to_ptr.vmem [resolvable:$true] %s44
      %50 = dma.hbm_to_vmem [thread:$0]  %s3, 512, %s45, [#allocation6], 128, 128, 8
    $region17: #{tpu_custom_call.1} parent=1 // pred_fallthru
      _
    // Predicated region
    $region18: #{tpu_custom_call.1} parent=1 // pred_check
      _
    $region19: #{tpu_custom_call.1} parent=1 // pred_check_branch
      %52 = sbr.rel (0) target = $region21
    $region20: #{tpu_custom_call.1} parent=1 // pred_region
      _
    $region21: #{tpu_custom_call.1} parent=1 // pred_fallthru
      _
    // Predicated region
    $region22: #{tpu_custom_call.1} parent=1 // pred_check
      _
    $region23: #{tpu_custom_call.1} parent=1 // pred_check_branch
      %54 = sbr.rel (0) target = $region25
    $region24: #{tpu_custom_call.1} parent=1 // pred_region
      %55 = dma.done [#allocation3], 256
    $region25: #{tpu_custom_call.1} parent=1 // pred_fallthru
      _
    // Predicated region
    $region26: #{tpu_custom_call.1} parent=1 // pred_check
      _
    $region27: #{tpu_custom_call.1} parent=1 // pred_check_branch
      %57 = sbr.rel (0) target = $region29
    $region28: #{tpu_custom_call.1} parent=1 // pred_region
      %58 = dma.done [#allocation6], 256
    $region29: #{tpu_custom_call.1} parent=1 // pred_fallthru
      _
    // Predicated region
    $region30: #{tpu_custom_call.1} parent=1 // pred_check
      _
    $region31: #{tpu_custom_call.1} parent=1 // pred_check_branch
      %60 = sbr.rel (0) target = $region33
    $region32: #{tpu_custom_call.1} parent=1 // pred_region
      %61 = dma.done [#allocation6], 512
    $region33: #{tpu_custom_call.1} parent=1 // pred_fallthru
      _
    %v62 = vld [vmem:[#allocation2] sm:$0xff]
    %v63 = vld [vmem:[#allocation2 + $0x8] sm:$0x3]
    %v64 = vld [vmem:[#allocation5] sm:$0xff]
    %v65 = vld [vmem:[#allocation5 + $0x8] sm:$0xff]
    %v66 = vld [vmem:[%s2] sm:$0x1]
    %v68 = vlaneseq
    %v69 = vshrl.u32 %v68, 7
    %v70 = vsub.s32 0, %v69
    %v71 = vrot.slane %v66, %v70
    %vm73 = vcmask 130048
    %v75 = vsel %vm73, %v62, 0
    %v78 = vsel %vm73, %v63, 0
    %80 = vmatprep.subr.mxu0 0.0
    %81 = vmatpush1.msra.mxu0 0.0
    %82 = vmatprep.subr.mxu0 0.0
    %83 = vmatpush1.msra.mxu0 0.0
    %84 = vmatprep.subr.mxu0 0.0
    %85 = vmatpush1.msra.mxu0 0.0
    %86 = vmatprep.subr.mxu0 0.0
    %87 = vmatpush1.msra.mxu0 0.0
    %88 = vmatprep.subr.mxu0 0.0
    %89 = vmatpush1.msra.mxu0 0.0
    %90 = vmatprep.subr.mxu0 0.0
    %91 = vmatpush1.msra.mxu0 0.0
    %92 = vmatprep.subr.mxu0 0.0
    %93 = vmatpush1.msra.mxu0 0.0
    %94 = vmatprep.subr.mxu0 0.0
    %95 = vmatpush1.msra.mxu0 0.0
    %96 = vmatprep.subr.mxu0 0.0
    %97 = vmatpush1.msra.mxu0 0.0
    %98 = vmatprep.subr.mxu0 0.0
    %99 = vmatpush1.msra.mxu0 0.0
    %100 = vmatprep.subr.mxu0 0.0
    %101 = vmatpush1.msra.mxu0 0.0
    %102 = vmatprep.subr.mxu0 0.0
    %103 = vmatpush1.msra.mxu0 0.0
    %104 = vmatprep.subr.mxu0 0.0
    %105 = vmatpush1.msra.mxu0 0.0
    %106 = vmatprep.subr.mxu0 0.0
    %107 = vmatpush1.msra.mxu0 0.0
    %108 = vmatprep.subr.mxu0 0.0
    %109 = vmatpush1.msra.mxu0 %v65
    %110 = vmatprep.subr.mxu0 0.0
    %111 = vmatpush1.msra.mxu0 %v64
    %112 = vmatprep.subr.mxu0 0.0
    %113 = vmatpush2.msra.mxu0 0.0
    %114 = vmatprep.subr.mxu0 0.0
    %115 = vmatpush2.msra.mxu0 0.0
    %116 = vmatprep.subr.mxu0 0.0
    %117 = vmatpush2.msra.mxu0 0.0
    %118 = vmatprep.subr.mxu0 0.0
    %119 = vmatpush2.msra.mxu0 0.0
    %120 = vmatprep.subr.mxu0 0.0
    %121 = vmatpush2.msra.mxu0 0.0
    %122 = vmatprep.subr.mxu0 0.0
    %123 = vmatpush2.msra.mxu0 0.0
    %124 = vmatprep.subr.mxu0 0.0
    %125 = vmatpush2.msra.mxu0 0.0
    %126 = vmatprep.subr.mxu0 0.0
    %127 = vmatpush2.msra.mxu0 0.0
    %128 = vmatprep.subr.mxu0 0.0
    %129 = vmatpush2.msra.mxu0 0.0
    %130 = vmatprep.subr.mxu0 0.0
    %131 = vmatpush2.msra.mxu0 0.0
    %132 = vmatprep.subr.mxu0 0.0
    %133 = vmatpush2.msra.mxu0 0.0
    %134 = vmatprep.subr.mxu0 0.0
    %135 = vmatpush2.msra.mxu0 0.0
    %136 = vmatprep.subr.mxu0 0.0
    %137 = vmatpush2.msra.mxu0 0.0
    %138 = vmatprep.subr.mxu0 0.0
    %139 = vmatpush2.msra.mxu0 0.0
    %140 = vmatprep.subr.mxu0 0.0
    %141 = vmatpush2.msra.mxu0 0.0
    %142 = vmatprep.subr.mxu0 0.0
    %143 = vmatpush2.msra.mxu0 0.0
    %144 = vmatprep.mubr.f32.mxu0 0.0
    %145 = vmatmul.mubr.f32.gmra.mxu0 %v75
    %v146 = vpop.f32.mrf.mxu0
    %v147 = vadd.f32 %v71, %v146
    %v148 = vpop.f32.mrf.mxu0
    %149 = vmatprep.mubr.f32.mxu0 0.0
    %150 = vmatmul.mubr.f32.gmra.mxu0 %v78
    %v151 = vpop.f32.mrf.mxu0
    %v152 = vadd.f32 %v71, %v151
    %v153 = vpop.f32.mrf.mxu0
    %154 = vdwg.mxu0
    %v155 = vmax.f32 %v147, 0.0
    %v156 = vmax.f32 %v152, 0.0
    %v157 = vld [vmem:[#allocation7] sm:$0xff]
    %v158 = vld [vmem:[#allocation7 + $0x8] sm:$0xff]
    %v159 = vld [vmem:[#allocation7 + $0x10] sm:$0xff]
    %v160 = vld [vmem:[#allocation7 + $0x18] sm:$0xff]
    %v161 = vld [vmem:[%s4] sm:$0x1]
    %v163 = vlaneseq
    %v164 = vshrl.u32 %v163, 7
    %v165 = vsub.s32 0, %v164
    %v166 = vrot.slane %v161, %v165
    %vm168 = vcmask 261120
    %v170 = vsel %vm168, %v155, 0
    %v173 = vsel %vm168, %v156, 0
    %175 = vmatprep.subr.mxu0 0.0
    %176 = vmatpush1.msra.mxu0 0.0
    %177 = vmatprep.subr.mxu0 0.0
    %178 = vmatpush1.msra.mxu0 0.0
    %179 = vmatprep.subr.mxu0 0.0
    %180 = vmatpush1.msra.mxu0 0.0
    %181 = vmatprep.subr.mxu0 0.0
    %182 = vmatpush1.msra.mxu0 0.0
    %183 = vmatprep.subr.mxu0 0.0
    %184 = vmatpush1.msra.mxu0 0.0
    %185 = vmatprep.subr.mxu0 0.0
    %186 = vmatpush1.msra.mxu0 0.0
    %187 = vmatprep.subr.mxu0 0.0
    %188 = vmatpush1.msra.mxu0 0.0
    %189 = vmatprep.subr.mxu0 0.0
    %190 = vmatpush1.msra.mxu0 0.0
    %191 = vmatprep.subr.mxu0 0.0
    %192 = vmatpush1.msra.mxu0 0.0
    %193 = vmatprep.subr.mxu0 0.0
    %194 = vmatpush1.msra.mxu0 0.0
    %195 = vmatprep.subr.mxu0 0.0
    %196 = vmatpush1.msra.mxu0 0.0
    %197 = vmatprep.subr.mxu0 0.0
    %198 = vmatpush1.msra.mxu0 0.0
    %199 = vmatprep.subr.mxu0 0.0
    %200 = vmatpush1.msra.mxu0 %v160
    %201 = vmatprep.subr.mxu0 0.0
    %202 = vmatpush1.msra.mxu0 %v159
    %203 = vmatprep.subr.mxu0 0.0
    %204 = vmatpush1.msra.mxu0 %v158
    %205 = vmatprep.subr.mxu0 0.0
    %206 = vmatpush1.msra.mxu0 %v157
    %207 = vmatprep.subr.mxu0 0.0
    %208 = vmatpush2.msra.mxu0 0.0
    %209 = vmatprep.subr.mxu0 0.0
    %210 = vmatpush2.msra.mxu0 0.0
    %211 = vmatprep.subr.mxu0 0.0
    %212 = vmatpush2.msra.mxu0 0.0
    %213 = vmatprep.subr.mxu0 0.0
    %214 = vmatpush2.msra.mxu0 0.0
    %215 = vmatprep.subr.mxu0 0.0
    %216 = vmatpush2.msra.mxu0 0.0
    %217 = vmatprep.subr.mxu0 0.0
    %218 = vmatpush2.msra.mxu0 0.0
    %219 = vmatprep.subr.mxu0 0.0
    %220 = vmatpush2.msra.mxu0 0.0
    %221 = vmatprep.subr.mxu0 0.0
    %222 = vmatpush2.msra.mxu0 0.0
    %223 = vmatprep.subr.mxu0 0.0
    %224 = vmatpush2.msra.mxu0 0.0
    %225 = vmatprep.subr.mxu0 0.0
    %226 = vmatpush2.msra.mxu0 0.0
    %227 = vmatprep.subr.mxu0 0.0
    %228 = vmatpush2.msra.mxu0 0.0
    %229 = vmatprep.subr.mxu0 0.0
    %230 = vmatpush2.msra.mxu0 0.0
    %231 = vmatprep.subr.mxu0 0.0
    %232 = vmatpush2.msra.mxu0 0.0
    %233 = vmatprep.subr.mxu0 0.0
    %234 = vmatpush2.msra.mxu0 0.0
    %235 = vmatprep.subr.mxu0 0.0
    %236 = vmatpush2.msra.mxu0 0.0
    %237 = vmatprep.subr.mxu0 0.0
    %238 = vmatpush2.msra.mxu0 0.0
    %239 = vmatprep.mubr.f32.mxu0 0.0
    %240 = vmatmul.mubr.f32.gmra.mxu0 %v170
    %v241 = vpop.f32.mrf.mxu0
    %v242 = vadd.f32 %v166, %v241
    %v243 = vpop.f32.mrf.mxu0
    %244 = vmatprep.mubr.f32.mxu0 0.0
    %245 = vmatmul.mubr.f32.gmra.mxu0 %v173
    %v246 = vpop.f32.mrf.mxu0
    %v247 = vadd.f32 %v166, %v246
    %v248 = vpop.f32.mrf.mxu0
    %249 = vdwg.mxu0
    %vm250 = vcmask 523264
    %251 = vst.msk [vmem:[#allocation8] sm:$0xff] %vm250, %v242
    %vm252 = vcmask 517120
    %253 = vst.msk [vmem:[#allocation8 + $0x8] sm:$0x3] %vm252, %v247
    // Predicated region
    $region34: #{tpu_custom_call.1} parent=1 // pred_check
      _
    $region35: #{tpu_custom_call.1} parent=1 // pred_check_branch
      %255 = sbr.rel (0) target = $region37
    $region36: #{tpu_custom_call.1} parent=1 // pred_region
      %s257 = ssub.s32 256, 256
      %258 = vsyncadd [#allocation4], %s257
      %s259 = sshll.u32 [#allocation8], 4
      %s260 = int_to_ptr.vmem [resolvable:$true] %s259
      %265 = dma.vmem_to_hbm [thread:$0]  %s260, 256, %s5, [#allocation4], 128, 128, 8
    $region37: #{tpu_custom_call.1} parent=1 // pred_fallthru
      _
    // Predicated region
    $region38: #{tpu_custom_call.1} parent=1 // pred_check
      _
    $region39: #{tpu_custom_call.1} parent=1 // pred_check_branch
      %267 = sbr.rel (0) target = $region41
    $region40: #{tpu_custom_call.1} parent=1 // pred_region
      %268 = dma.done [#allocation4], 256
    $region41: #{tpu_custom_call.1} parent=1 // pred_fallthru
      _
    %269 = vsyncpa [#allocation3], 1
    %270 = vsyncpa [#allocation6], 1
    %271 = vsyncpa [#allocation4], 1

</llo_original>
